<compile_context>
chip_gen: v6e
topology: v6e:2x2x1
jax: 0.10.0
libtpu: 0.0.40
codegen_flags: <defaults>
</compile_context>

<pallas_src>
import math
import functools

import jax
import jax.numpy as jnp
from jax.experimental import pallas as pl
from jax.experimental.pallas import tpu as pltpu


def _round_up(x, m):
    return (x + m - 1) // m * m


# ----------------------------- Pallas kernel -------------------------------

def _flatten_head_kernel(x_ref, w_ref, b_ref, o_ref):
    # x_ref: (TM, nf)   w_ref: (nf, TN)   b_ref: (1, TN)   o_ref: (TM, TN)
    y = jnp.dot(x_ref[...], w_ref[...], preferred_element_type=jnp.float32)
    y = y + b_ref[...]          # bias-add rides as a VPU epilogue of the matmul
    o_ref[...] = y.astype(o_ref.dtype)


# ----------------------------- param prep (once) ----------------------------

def prepare_flatten_head_params(w, b):
    """Pad Linear params to a lane-aligned output width ONCE, at init time.

    w: (nf, target_window)   b: (target_window,)
    Returns (w_pad (nf, Np), b_pad (1, Np)) with Np = round_up(target_window, 128),
    so every store inside the kernel is an unmasked full-lane vst and the forward
    never has to re-pad under jit.
    """
    nf, n = w.shape
    np_ = _round_up(n, 128)
    if np_ != n:
        w = jnp.pad(w, ((0, 0), (0, np_ - n)))
        b = jnp.pad(b, ((0, np_ - n),))
    return w, b.reshape(1, np_)


# ------------------------------- wrapper ------------------------------------

def flatten_head(x, w_pad, b_pad, target_window):
    """FlattenHead forward (eval mode: dropout = identity).

    x:      (..., d_model, num_patches) -- last two dims flattened row-major,
            matching torch.nn.Flatten(start_dim=-2).
    w_pad:  (nf, Np)  lane-padded weight from prepare_flatten_head_params
            (nf = d_model * num_patches).
    b_pad:  (1, Np)   lane-padded bias.
    target_window: static int, valid output width (Np >= target_window).
    Returns (..., target_window).
    """
    *lead, d_model, num_patches = x.shape
    nf = d_model * num_patches
    nf_w, Np = w_pad.shape
    assert nf_w == nf, (w_pad.shape, nf)
    assert Np % 128 == 0 and Np >= target_window, (Np, target_window)
    M = math.prod(lead) if lead else 1

    # Flatten(start_dim=-2) + collapse leading dims into rows (sublane axis).
    # Free host-side reshape -- row-major, identical to torch.flatten.
    x2 = x.reshape(M, nf)

    itemsize = 4  # f32 throughout

    # --- tiling --------------------------------------------------------------
    # Output-column tile: multiple of 128, keeps the per-step weight tile small.
    TN = min(Np, 512)
    grid_n = pl.cdiv(Np, TN)

    # Row tile from an explicit VMEM budget (double-buffered x/out tiles + weight
    # tile + bias), conservative enough for v7x's 64 MiB physical VMEM.
    VMEM_BUDGET = 48 << 20
    w_tile_bytes = 2 * nf * TN * itemsize          # double-buffered weight tile
    b_tile_bytes = 2 * 8 * TN * itemsize           # bias (sublane-padded), 2 bufs
    avail = VMEM_BUDGET - w_tile_bytes - b_tile_bytes - (2 << 20)
    per_row = 2 * itemsize * (nf + TN)             # x tile + out tile, 2 bufs each
    tm_budget = (avail // per_row) // 8 * 8 if avail > 0 else 8
    TM = max(8, min(_round_up(M, 8), max(tm_budget, 8), 1024))
    grid_m = pl.cdiv(M, TM)

    footprint = (2 * (TM * nf + nf * TN + TM * TN + 8 * TN) * itemsize) + (2 << 20)
    vmem_limit = int(min(max(footprint, 16 << 20), 56 << 20))

    cost = pl.CostEstimate(
        flops=2 * M * nf * Np,
        transcendentals=0,
        bytes_accessed=(M * nf + nf * Np + Np + M * Np) * itemsize,
    )

    out = pl.pallas_call(
        _flatten_head_kernel,
        out_shape=jax.ShapeDtypeStruct((M, Np), x.dtype),
        grid=(grid_m, grid_n),
        in_specs=[
            pl.BlockSpec((TM, nf), lambda i, j: (i, 0)),   # activations: row tiles
            pl.BlockSpec((nf, TN), lambda i, j: (0, j)),   # weight: column tiles
            pl.BlockSpec((1, TN), lambda i, j: (0, j)),    # bias: column tiles
        ],
        out_specs=pl.BlockSpec((TM, TN), lambda i, j: (i, j)),
        compiler_params=pltpu.CompilerParams(
            dimension_semantics=("parallel", "parallel"),
            vmem_limit_bytes=vmem_limit,
        ),
        cost_estimate=cost,
    )(x2, w_pad, b_pad)

    if Np != target_window:
        out = out[:, :target_window]
    return out.reshape(tuple(lead) + (target_window,))


# --------------------------------- main --------------------------------------

if __name__ == "__main__":
    # Shapes consistent with FlattenHead usage inside PatchTST:
    #   x: (batch, n_vars, d_model, num_patches), nf = d_model * num_patches.
    B, n_vars, d_model, num_patches = 2, 4, 32, 4
    nf = d_model * num_patches          # 128
    target_window = 128                 # prediction length

    key = jax.random.PRNGKey(0)
    kx, kw, kb = jax.random.split(key, 3)

    x = jax.random.normal(kx, (B, n_vars, d_model, num_patches), dtype=jnp.float32)
    # nn.Linear default init: U(-1/sqrt(nf), 1/sqrt(nf)); weight here as (nf, out)
    # (i.e. the transpose of torch's stored (out, in) layout).
    bound = 1.0 / math.sqrt(nf)
    w = jax.random.uniform(kw, (nf, target_window), minval=-bound, maxval=bound,
                           dtype=jnp.float32)
    b = jax.random.uniform(kb, (target_window,), minval=-bound, maxval=bound,
                           dtype=jnp.float32)

    # Pad params ONCE, outside the jitted forward (perf-review item #1).
    w_pad, b_pad = prepare_flatten_head_params(w, b)

    fwd = jax.jit(functools.partial(flatten_head, target_window=target_window))
    out = jax.block_until_ready(fwd(x, w_pad, b_pad))

    # Pure-JAX reference (flatten -> linear; dropout is identity in eval).
    ref = x.reshape(B, n_vars, nf) @ w + b

    assert out.shape == (B, n_vars, target_window), out.shape
    assert bool(jnp.all(jnp.isfinite(out)))
    assert bool(jnp.allclose(out, ref, atol=1e-5, rtol=1e-5))
    print("KERNEL_OK")
</pallas_src>

<mosaic_0001>
module attributes {stable_mosaic.version = 11 : i64} {
  func.func @_flatten_head_kernel(%arg0: i32, %arg1: i32, %arg2: memref<8x128xf32, #tpu.memory_space<vmem>>, %arg3: memref<128x128xf32, #tpu.memory_space<vmem>>, %arg4: memref<1x128xf32, #tpu.memory_space<vmem>>, %arg5: memref<8x128xf32, #tpu.memory_space<vmem>>) attributes {dimension_semantics = [#tpu.dimension_semantics<parallel>, #tpu.dimension_semantics<parallel>], iteration_bounds = array<i64: 1, 1>, scalar_prefetch = 0 : i64, scratch_operands = 0 : i64, tpu.core_type = #tpu.core_type<tc>, window_params = [{transform_indices = @transform_0, window_bounds = array<i64: 8, 128>}, {transform_indices = @transform_1, window_bounds = array<i64: 128, 128>}, {transform_indices = @transform_2, window_bounds = array<i64: 1, 128>}, {transform_indices = @transform_3, window_bounds = array<i64: 8, 128>}]} {
    %c0 = arith.constant 0 : index
    %c0_0 = arith.constant 0 : index
    %0 = vector.load %arg2[%c0, %c0_0] : memref<8x128xf32, #tpu.memory_space<vmem>>, vector<8x128xf32>
    %c0_1 = arith.constant 0 : index
    %c0_2 = arith.constant 0 : index
    %1 = vector.load %arg3[%c0_1, %c0_2] : memref<128x128xf32, #tpu.memory_space<vmem>>, vector<128x128xf32>
    %cst = arith.constant dense<0.000000e+00> : vector<8x128xf32>
    %2 = tpu.matmul %0, %1, %cst {dimension_numbers = #tpu.dot_dimension_numbers<[1], [0], [0], [1], [0, 0, 1, 1], [], []>} : vector<8x128xf32>, vector<128x128xf32>, vector<8x128xf32> -> vector<8x128xf32>
    %c0_3 = arith.constant 0 : index
    %c0_4 = arith.constant 0 : index
    %3 = vector.load %arg4[%c0_3, %c0_4] : memref<1x128xf32, #tpu.memory_space<vmem>>, vector<1x128xf32>
    %4 = vector.broadcast %3 : vector<1x128xf32> to vector<8x128xf32>
    %5 = arith.addf %2, %4 : vector<8x128xf32>
    %c0_5 = arith.constant 0 : index
    %c0_6 = arith.constant 0 : index
    %6 = vector.load %arg5[%c0_5, %c0_6] : memref<8x128xf32, #tpu.memory_space<vmem>>, vector<8x128xf32>
    tpu.vector_store %arg5[%c0_5, %c0_6], %5 {strides = array<i32>} : memref<8x128xf32, #tpu.memory_space<vmem>>, vector<8x128xf32>,
    return
  }
  func.func @transform_0(%arg0: i32, %arg1: i32) -> (i32, i32) {
    %c0_i32 = arith.constant 0 : i32
    %c0_i32_0 = arith.constant 0 : i32
    return %arg0, %c0_i32 : i32, i32
  }
  func.func @transform_1(%arg0: i32, %arg1: i32) -> (i32, i32) {
    %c0_i32 = arith.constant 0 : i32
    %c0_i32_0 = arith.constant 0 : i32
    return %c0_i32, %arg1 : i32, i32
  }
  func.func @transform_2(%arg0: i32, %arg1: i32) -> (i32, i32) {
    %c0_i32 = arith.constant 0 : i32
    %c0_i32_0 = arith.constant 0 : i32
    return %c0_i32, %arg1 : i32, i32
  }
  func.func @transform_3(%arg0: i32, %arg1: i32) -> (i32, i32) {
    %c0_i32 = arith.constant 0 : i32
    return %arg0, %arg1 : i32, i32
  }
}

</mosaic_0001>

<llo_original>
// kernel: flatten_head.1
$region0: #{flatten_head.1}
  #allocation0 [shape = 'u32[]', space=smem, size = 0x4, offset = 0x4, fixed_abs, tag = 'smem constant byte address 0x4 - core index']
  #allocation1 [shape = 'u32[144,128]{1,0:T(1,128)}', space=vmem, size = 0x12000, scoped, tag = 'internal scratch']
  %s0 = inlined_call_operand.vmem [shape: f32[8,128], index: 0, kind: input, shape index: {}]
  %s1 = inlined_call_operand.vmem [shape: f32[128,128], index: 1, kind: input, shape index: {}]
  %s2 = inlined_call_operand.vmem [shape: f32[1,128], index: 2, kind: input, shape index: {}]
  %s3 = inlined_call_operand.hbm [shape: f32[8,128], index: 3, kind: output, shape index: {}]
  %s4 = sld [smem:[#allocation0]]
  $region22: #{flatten_head.1} parent=0
    _
  %s6 = ssub.s32 1, %s4
  %s7 = scalar_select 0, %s6, %s4
  $region1: #{flatten_head.1} parent=0
    #allocation2 [shape = 'u8[4096]{0}', space=vmem, size = 0x1000, scoped, tag = 'output window, operand 0, single buffered']
    #allocation3 [shape = 's32[1]{0}', space=sflag, size = 0x4, scoped, tag = 'scoped memory for flatten_head.1']
    %8 = vsyncpa [#allocation3], 0
    // Predicated region
    $region2: #{flatten_head.1} parent=1 // pred_check
      _
    $region3: #{flatten_head.1} parent=1 // pred_check_branch
      %10 = sbr.rel (0) target = $region5
    $region4: #{flatten_head.1} parent=1 // pred_region
      _
    $region5: #{flatten_head.1} parent=1 // pred_fallthru
      _
    // Predicated region
    $region6: #{flatten_head.1} parent=1 // pred_check
      _
    $region7: #{flatten_head.1} parent=1 // pred_check_branch
      %12 = sbr.rel (0) target = $region9
    $region8: #{flatten_head.1} parent=1 // pred_region
      _
    $region9: #{flatten_head.1} parent=1 // pred_fallthru
      _
    // Predicated region
    $region10: #{flatten_head.1} parent=1 // pred_check
      _
    $region11: #{flatten_head.1} parent=1 // pred_check_branch
      %14 = sbr.rel (0) target = $region13
    $region12: #{flatten_head.1} parent=1 // pred_region
      _
    $region13: #{flatten_head.1} parent=1 // pred_fallthru
      _
    %v15 = vld [vmem:[%s0] sm:$0xff]
    %v16 = vld [vmem:[%s1] sm:$0xff]
    %v17 = vld [vmem:[%s1 + $0x8] sm:$0xff]
    %v18 = vld [vmem:[%s1 + $0x10] sm:$0xff]
    %v19 = vld [vmem:[%s1 + $0x18] sm:$0xff]
    %v20 = vld [vmem:[%s1 + $0x20] sm:$0xff]
    %v21 = vld [vmem:[%s1 + $0x28] sm:$0xff]
    %v22 = vld [vmem:[%s1 + $0x30] sm:$0xff]
    %v23 = vld [vmem:[%s1 + $0x38] sm:$0xff]
    %v24 = vld [vmem:[%s1 + $0x40] sm:$0xff]
    %v25 = vld [vmem:[%s1 + $0x48] sm:$0xff]
    %v26 = vld [vmem:[%s1 + $0x50] sm:$0xff]
    %v27 = vld [vmem:[%s1 + $0x58] sm:$0xff]
    %v28 = vld [vmem:[%s1 + $0x60] sm:$0xff]
    %v29 = vld [vmem:[%s1 + $0x68] sm:$0xff]
    %v30 = vld [vmem:[%s1 + $0x70] sm:$0xff]
    %v31 = vld [vmem:[%s1 + $0x78] sm:$0xff]
    %v32 = vld [vmem:[%s2] sm:$0x1]
    %v34 = vlaneseq
    %v35 = vshrl.u32 %v34, 7
    %v36 = vsub.s32 0, %v35
    %v37 = vrot.slane %v32, %v36
    %39 = vmatprep.subr.mxu0 0.0
    %40 = vmatpush1.msra.mxu0 %v31
    %41 = vmatprep.subr.mxu0 0.0
    %42 = vmatpush1.msra.mxu0 %v30
    %43 = vmatprep.subr.mxu0 0.0
    %44 = vmatpush1.msra.mxu0 %v29
    %45 = vmatprep.subr.mxu0 0.0
    %46 = vmatpush1.msra.mxu0 %v28
    %47 = vmatprep.subr.mxu0 0.0
    %48 = vmatpush1.msra.mxu0 %v27
    %49 = vmatprep.subr.mxu0 0.0
    %50 = vmatpush1.msra.mxu0 %v26
    %51 = vmatprep.subr.mxu0 0.0
    %52 = vmatpush1.msra.mxu0 %v25
    %53 = vmatprep.subr.mxu0 0.0
    %54 = vmatpush1.msra.mxu0 %v24
    %55 = vmatprep.subr.mxu0 0.0
    %56 = vmatpush1.msra.mxu0 %v23
    %57 = vmatprep.subr.mxu0 0.0
    %58 = vmatpush1.msra.mxu0 %v22
    %59 = vmatprep.subr.mxu0 0.0
    %60 = vmatpush1.msra.mxu0 %v21
    %61 = vmatprep.subr.mxu0 0.0
    %62 = vmatpush1.msra.mxu0 %v20
    %63 = vmatprep.subr.mxu0 0.0
    %64 = vmatpush1.msra.mxu0 %v19
    %65 = vmatprep.subr.mxu0 0.0
    %66 = vmatpush1.msra.mxu0 %v18
    %67 = vmatprep.subr.mxu0 0.0
    %68 = vmatpush1.msra.mxu0 %v17
    %69 = vmatprep.subr.mxu0 0.0
    %70 = vmatpush1.msra.mxu0 %v16
    %71 = vmatprep.subr.mxu0 0.0
    %72 = vmatpush2.msra.mxu0 0.0
    %73 = vmatprep.subr.mxu0 0.0
    %74 = vmatpush2.msra.mxu0 0.0
    %75 = vmatprep.subr.mxu0 0.0
    %76 = vmatpush2.msra.mxu0 0.0
    %77 = vmatprep.subr.mxu0 0.0
    %78 = vmatpush2.msra.mxu0 0.0
    %79 = vmatprep.subr.mxu0 0.0
    %80 = vmatpush2.msra.mxu0 0.0
    %81 = vmatprep.subr.mxu0 0.0
    %82 = vmatpush2.msra.mxu0 0.0
    %83 = vmatprep.subr.mxu0 0.0
    %84 = vmatpush2.msra.mxu0 0.0
    %85 = vmatprep.subr.mxu0 0.0
    %86 = vmatpush2.msra.mxu0 0.0
    %87 = vmatprep.subr.mxu0 0.0
    %88 = vmatpush2.msra.mxu0 0.0
    %89 = vmatprep.subr.mxu0 0.0
    %90 = vmatpush2.msra.mxu0 0.0
    %91 = vmatprep.subr.mxu0 0.0
    %92 = vmatpush2.msra.mxu0 0.0
    %93 = vmatprep.subr.mxu0 0.0
    %94 = vmatpush2.msra.mxu0 0.0
    %95 = vmatprep.subr.mxu0 0.0
    %96 = vmatpush2.msra.mxu0 0.0
    %97 = vmatprep.subr.mxu0 0.0
    %98 = vmatpush2.msra.mxu0 0.0
    %99 = vmatprep.subr.mxu0 0.0
    %100 = vmatpush2.msra.mxu0 0.0
    %101 = vmatprep.subr.mxu0 0.0
    %102 = vmatpush2.msra.mxu0 0.0
    %103 = vmatprep.mubr.f32.mxu0 0.0
    %104 = vmatmul.mubr.f32.gmra.mxu0 %v15
    %v105 = vpop.f32.mrf.mxu0
    %v106 = vadd.f32 %v37, %v105
    %v107 = vpop.f32.mrf.mxu0
    %108 = vdwg.mxu0
    %109 = vst [vmem:[#allocation2] sm:$0xff] %v106
    // Predicated region
    $region14: #{flatten_head.1} parent=1 // pred_check
      _
    $region15: #{flatten_head.1} parent=1 // pred_check_branch
      %111 = sbr.rel (0) target = $region17
    $region16: #{flatten_head.1} parent=1 // pred_region
      %s113 = ssub.s32 128, 128
      %114 = vsyncadd [#allocation3], %s113
      %s116 = sshll.u32 [#allocation2], 4
      %s117 = int_to_ptr.vmem [resolvable:$true] %s116
      %119 = dma.vmem_to_hbm [thread:$0]  %s117, 128, %s3, [#allocation3]
    $region17: #{flatten_head.1} parent=1 // pred_fallthru
      _
    // Predicated region
    $region18: #{flatten_head.1} parent=1 // pred_check
      _
    $region19: #{flatten_head.1} parent=1 // pred_check_branch
      %121 = sbr.rel (0) target = $region21
    $region20: #{flatten_head.1} parent=1 // pred_region
      %122 = dma.done [#allocation3], 128
    $region21: #{flatten_head.1} parent=1 // pred_fallthru
      _
    %123 = vsyncpa [#allocation3], 1

</llo_original>
